<compile_context>
chip_gen: v7x
topology: tpu7x:2x2x1
jax: 0.10.0
libtpu: 0.0.40
codegen_flags: <defaults>
</compile_context>

<pallas_src>
import functools

import jax
import jax.numpy as jnp
from jax import lax
from jax.experimental import pallas as pl
from jax.experimental.pallas import tpu as pltpu


def lstm_kernel(x_ref, ew_ref, whh_ref, b_ref, wout_ref, bout_ref, out_ref,
                g_sc, *, seq, batch_p, hidden, vocab_p):
    Bp, H = batch_p, hidden

    # --- Fused embedding lookup + input projection for all timesteps. ---
    # emb_wih = emb @ W_ih^T was precomposed offline, so ONE
    # (seq*Bp, Vp) @ (Vp, 4H) MXU pass yields every timestep's packed
    # input-gate pre-activations (gate order i|f|g|o, 32 lanes each).
    tok = x_ref[...]                                               # (seq*Bp, 1) int32
    onehot = (tok == lax.broadcasted_iota(jnp.int32, (seq * Bp, vocab_p), 1)
              ).astype(jnp.float32)                                # (seq*Bp, Vp)
    g_sc[...] = (jnp.dot(onehot, ew_ref[...],
                         preferred_element_type=jnp.float32)
                 + b_ref[...])                                     # (seq*Bp, 4H)

    # --- Serial recurrence.  Gates are packed into one 128-lane block, so
    # each step is a single small MXU pass plus two full-vreg EUP passes
    # (sigmoid + tanh) over the packed pre-activations; gate extraction is a
    # static lane slice (XLU rotate, off the VALU/MXU critical path). ---
    # TODO(synk): hold W_hh weight-stationary across the 8 steps via
    # pltpu.matmul_push_rhs / matmul_acc_lhs / matmul_pop to drop the
    # per-step RHS push from the serial chain.
    def step(t, carry):
        h, c = carry
        row = pl.multiple_of(t * Bp, Bp)
        g = g_sc[pl.ds(row, Bp), :] + jnp.dot(
            h, whh_ref[...], preferred_element_type=jnp.float32)   # (Bp, 4H)
        sig = jax.nn.sigmoid(g)            # lanes: [  i  |  f  |  .  |  o  ]
        th = jnp.tanh(g)                   # lanes: [  .  |  .  |  g  |  .  ]
        i_g = sig[:, 0 * H:1 * H]
        f_g = sig[:, 1 * H:2 * H]
        g_g = th[:, 2 * H:3 * H]
        o_g = sig[:, 3 * H:4 * H]
        c_new = f_g * c + i_g * g_g
        h_new = o_g * jnp.tanh(c_new)
        return h_new, c_new

    h0 = jnp.zeros((Bp, H), jnp.float32)
    c0 = jnp.zeros((Bp, H), jnp.float32)
    h_final, _ = lax.fori_loop(0, seq, step, (h0, c0), unroll=True)

    # Final Linear(H, out) on h_n (output padded to a full 128-lane store).
    out_ref[...] = (jnp.dot(h_final, wout_ref[...],
                            preferred_element_type=jnp.float32)
                    + bout_ref[...]).astype(out_ref.dtype)


def _round_up(n, m):
    return ((n + m - 1) // m) * m


def prepare_params(params):
    """One-time weight padding / precomposition (hoisted out of the per-call path)."""
    f32 = jnp.float32
    emb = params["embedding"].astype(f32)          # (V, H)
    w_ih_t = params["w_ih_t"].astype(f32)          # (H, 4H)
    w_hh_t = params["w_hh_t"].astype(f32)          # (H, 4H) -- 32 rows x 128 lanes, tile-friendly as-is
    b = params["b"].astype(f32)                    # (1, 4H)
    w_out_t = params["w_out_t"].astype(f32)        # (H, out)
    b_out = params["b_out"].astype(f32)            # (1, out)

    V, H = emb.shape
    G = w_ih_t.shape[1]                            # 4H (== 128 for H=32)
    out_size = w_out_t.shape[1]
    LANE = 128
    Vp = _round_up(V, LANE)                        # 128: clean one-hot contraction tile
    Op = _round_up(out_size, LANE)                 # 128: unmasked output store

    # Precompose embedding with the input projection: token -> packed input gates.
    emb_wih = jnp.dot(emb, w_ih_t, precision=lax.Precision.HIGHEST)   # (V, 4H)

    return {
        "emb_wih": jnp.zeros((Vp, G), f32).at[:V, :].set(emb_wih),    # (Vp, 4H)
        "whh": w_hh_t,                                                # (H, 4H)
        "b": b,                                                       # (1, 4H)
        "w_out": jnp.zeros((H, Op), f32).at[:, :out_size].set(w_out_t),
        "b_out": jnp.zeros((1, Op), f32).at[:, :out_size].set(b_out),
    }


@functools.partial(jax.jit, static_argnames=("out_size",))
def highest_number_lstm_forward(x, prep, *, out_size):
    """x: int32 (seq, batch). Returns {'logits': (batch, out_size)} like the torch module."""
    seq, batch = x.shape
    Vp, G = prep["emb_wih"].shape
    H = prep["whh"].shape[0]
    Op = prep["w_out"].shape[1]
    assert G == 4 * H

    SUB = 8
    Bp = _round_up(batch, SUB)                     # full sublane tile

    # Only token padding remains in the per-call path (padded batch rows use
    # token 0; their outputs are sliced off below).
    x_p = jnp.zeros((seq, Bp), jnp.int32).at[:, :batch].set(x.astype(jnp.int32))
    x_flat = x_p.reshape(seq * Bp, 1)

    kernel = functools.partial(lstm_kernel, seq=seq, batch_p=Bp, hidden=H,
                               vocab_p=Vp)
    vmem_spec = pl.BlockSpec(memory_space=pltpu.MemorySpace.VMEM)

    logits_p = pl.pallas_call(
        kernel,
        out_shape=jax.ShapeDtypeStruct((Bp, Op), jnp.float32),
        in_specs=[vmem_spec] * 6,
        out_specs=vmem_spec,
        scratch_shapes=[
            pltpu.VMEM((seq * Bp, G), jnp.float32),   # precomputed packed input gates
        ],
    )(x_flat, prep["emb_wih"], prep["whh"], prep["b"], prep["w_out"],
      prep["b_out"])

    # TODO(synk): for much larger seq/batch/H, chunk the precomputed gates over
    # seq with pltpu.emit_pipeline (v7x has only 64 MiB VMEM) and add a
    # batch-tile "parallel" grid axis so v7x's second TensorCore gets its own
    # batch slice of the recurrence.
    return {"logits": logits_p[:batch, :out_size]}


def make_params(key, vocab=11, hidden=32, out_size=5):
    ks = jax.random.split(key, 7)
    scale = 1.0 / jnp.sqrt(hidden)
    emb = jax.random.normal(ks[0], (vocab, hidden), jnp.float32)
    w_ih = jax.random.uniform(ks[1], (4 * hidden, hidden), jnp.float32, -scale, scale)
    w_hh = jax.random.uniform(ks[2], (4 * hidden, hidden), jnp.float32, -scale, scale)
    b_ih = jax.random.uniform(ks[3], (4 * hidden,), jnp.float32, -scale, scale)
    b_hh = jax.random.uniform(ks[4], (4 * hidden,), jnp.float32, -scale, scale)
    w_out = jax.random.uniform(ks[5], (out_size, hidden), jnp.float32, -scale, scale)
    b_out = jax.random.uniform(ks[6], (out_size,), jnp.float32, -scale, scale)
    return {
        "embedding": emb,
        "w_ih_t": w_ih.T,                      # (H, 4H)
        "w_hh_t": w_hh.T,                      # (H, 4H)
        "b": (b_ih + b_hh)[None, :],           # (1, 4H)  == b_ih + b_hh
        "w_out_t": w_out.T,                    # (H, out)
        "b_out": b_out[None, :],               # (1, out)
    }


def reference_forward(x, params):
    """Pure-JAX reference of the PyTorch module (gate order i,f,g,o)."""
    emb = params["embedding"]
    e = jnp.take(emb, x, axis=0).astype(jnp.float32)       # (seq, batch, H)
    H = emb.shape[1]
    batch = x.shape[1]
    h = jnp.zeros((batch, H), jnp.float32)
    c = jnp.zeros((batch, H), jnp.float32)

    def step(carry, e_t):
        h, c = carry
        gates = e_t @ params["w_ih_t"] + h @ params["w_hh_t"] + params["b"]
        i = jax.nn.sigmoid(gates[:, 0:H])
        f = jax.nn.sigmoid(gates[:, H:2 * H])
        g = jnp.tanh(gates[:, 2 * H:3 * H])
        o = jax.nn.sigmoid(gates[:, 3 * H:4 * H])
        c = f * c + i * g
        h = o * jnp.tanh(c)
        return (h, c), None

    (h, c), _ = jax.lax.scan(step, (h, c), e)
    logits = h @ params["w_out_t"] + params["b_out"]
    return {"logits": logits}


if __name__ == "__main__":
    key = jax.random.PRNGKey(0)
    pkey, xkey = jax.random.split(key)

    seq, batch = 8, 2
    params = make_params(pkey, vocab=11, hidden=32, out_size=5)
    prep = prepare_params(params)          # one-time padding / precomposition
    x = jax.random.randint(xkey, (seq, batch), 0, 11, dtype=jnp.int32)

    out = highest_number_lstm_forward(x, prep, out_size=5)
    logits = jax.block_until_ready(out["logits"])

    ref = reference_forward(x, params)["logits"]
    assert logits.shape == (batch, 5)
    assert jnp.allclose(logits, ref, atol=1e-5, rtol=1e-5), (logits, ref)

    print("KERNEL_OK")
</pallas_src>

<mosaic_0001>
module attributes {stable_mosaic.version = 11 : i64} {
  func.func @lstm_kernel(%arg0: memref<64x1xi32, #tpu.memory_space<vmem>>, %arg1: memref<128x128xf32, #tpu.memory_space<vmem>>, %arg2: memref<32x128xf32, #tpu.memory_space<vmem>>, %arg3: memref<1x128xf32, #tpu.memory_space<vmem>>, %arg4: memref<32x128xf32, #tpu.memory_space<vmem>>, %arg5: memref<1x128xf32, #tpu.memory_space<vmem>>, %arg6: memref<8x128xf32, #tpu.memory_space<vmem>>, %arg7: memref<64x128xf32, #tpu.memory_space<vmem>>) attributes {dimension_semantics = [], scalar_prefetch = 0 : i64, scratch_operands = 1 : i64, tpu.core_type = #tpu.core_type<tc>} {
    %c0 = arith.constant 0 : index
    %c0_0 = arith.constant 0 : index
    %0 = vector.load %arg0[%c0, %c0_0] : memref<64x1xi32, #tpu.memory_space<vmem>>, vector<64x1xi32>
    %1 = tpu.iota {dimensions = array<i32: 1>} : vector<64x128xi32>
    %2 = vector.broadcast %0 : vector<64x1xi32> to vector<64x128xi32>
    %3 = arith.cmpi eq, %2, %1 : vector<64x128xi32>
    %4 = arith.extui %3 : vector<64x128xi1> to vector<64x128xi32>
    %5 = arith.sitofp %4 : vector<64x128xi32> to vector<64x128xf32>
    %c0_1 = arith.constant 0 : index
    %c0_2 = arith.constant 0 : index
    %6 = vector.load %arg1[%c0_1, %c0_2] : memref<128x128xf32, #tpu.memory_space<vmem>>, vector<128x128xf32>
    %cst = arith.constant dense<0.000000e+00> : vector<64x128xf32>
    %7 = tpu.matmul %5, %6, %cst {dimension_numbers = #tpu.dot_dimension_numbers<[1], [0], [0], [1], [0, 0, 1, 1], [], []>} : vector<64x128xf32>, vector<128x128xf32>, vector<64x128xf32> -> vector<64x128xf32>
    %c0_3 = arith.constant 0 : index
    %c0_4 = arith.constant 0 : index
    %8 = vector.load %arg3[%c0_3, %c0_4] : memref<1x128xf32, #tpu.memory_space<vmem>>, vector<1x128xf32>
    %9 = vector.broadcast %8 : vector<1x128xf32> to vector<64x128xf32>
    %10 = arith.addf %7, %9 : vector<64x128xf32>
    %c0_5 = arith.constant 0 : index
    %c0_6 = arith.constant 0 : index
    %11 = vector.load %arg7[%c0_5, %c0_6] : memref<64x128xf32, #tpu.memory_space<vmem>>, vector<64x128xf32>
    tpu.vector_store %arg7[%c0_5, %c0_6], %10 {strides = array<i32>} : memref<64x128xf32, #tpu.memory_space<vmem>>, vector<64x128xf32>,
    %cst_7 = arith.constant 0.000000e+00 : f32
    %12 = vector.broadcast %cst_7 : f32 to vector<8x32xf32>
    %cst_8 = arith.constant 0.000000e+00 : f32
    %13 = vector.broadcast %cst_8 : f32 to vector<8x32xf32>
    %c0_i32 = arith.constant 0 : i32
    %c8_i32 = arith.constant 8 : i32
    %14 = arith.muli %c0_i32, %c8_i32 : i32
    %15 = tpu.assume_multiple %14, 8 : i32
    %16 = arith.index_cast %15 : i32 to index
    %c0_9 = arith.constant 0 : index
    %17 = vector.load %arg7[%16, %c0_9] : memref<64x128xf32, #tpu.memory_space<vmem>>, vector<8x128xf32>
    %c0_10 = arith.constant 0 : index
    %c0_11 = arith.constant 0 : index
    %18 = vector.load %arg2[%c0_10, %c0_11] : memref<32x128xf32, #tpu.memory_space<vmem>>, vector<32x128xf32>
    %cst_12 = arith.constant dense<0.000000e+00> : vector<8x128xf32>
    %19 = tpu.matmul %12, %18, %cst_12 {dimension_numbers = #tpu.dot_dimension_numbers<[1], [0], [0], [1], [0, 0, 1, 1], [], []>} : vector<8x32xf32>, vector<32x128xf32>, vector<8x128xf32> -> vector<8x128xf32>
    %20 = arith.addf %17, %19 : vector<8x128xf32>
    %21 = arith.negf %20 : vector<8x128xf32>
    %22 = math.exp %21 : vector<8x128xf32>
    %cst_13 = arith.constant 1.000000e+00 : f32
    %23 = vector.broadcast %cst_13 : f32 to vector<8x128xf32>
    %24 = arith.addf %23, %22 : vector<8x128xf32>
    %25 = arith.divf %23, %24 : vector<8x128xf32>
    %26 = math.tanh %20 : vector<8x128xf32>
    %27 = vector.extract_strided_slice %25 {offsets = [0, 0], sizes = [8, 32], strides = [1, 1]} : vector<8x128xf32> to vector<8x32xf32>
    %28 = vector.extract_strided_slice %25 {offsets = [0, 32], sizes = [8, 32], strides = [1, 1]} : vector<8x128xf32> to vector<8x32xf32>
    %29 = vector.extract_strided_slice %26 {offsets = [0, 64], sizes = [8, 32], strides = [1, 1]} : vector<8x128xf32> to vector<8x32xf32>
    %30 = vector.extract_strided_slice %25 {offsets = [0, 96], sizes = [8, 32], strides = [1, 1]} : vector<8x128xf32> to vector<8x32xf32>
    %31 = arith.mulf %28, %13 : vector<8x32xf32>
    %32 = arith.mulf %27, %29 : vector<8x32xf32>
    %33 = arith.addf %31, %32 : vector<8x32xf32>
    %34 = math.tanh %33 : vector<8x32xf32>
    %35 = arith.mulf %30, %34 : vector<8x32xf32>
    %c1_i32 = arith.constant 1 : i32
    %c8_i32_14 = arith.constant 8 : i32
    %36 = arith.muli %c1_i32, %c8_i32_14 : i32
    %37 = tpu.assume_multiple %36, 8 : i32
    %38 = arith.index_cast %37 : i32 to index
    %c0_15 = arith.constant 0 : index
    %39 = vector.load %arg7[%38, %c0_15] : memref<64x128xf32, #tpu.memory_space<vmem>>, vector<8x128xf32>
    %c0_16 = arith.constant 0 : index
    %c0_17 = arith.constant 0 : index
    %40 = vector.load %arg2[%c0_16, %c0_17] : memref<32x128xf32, #tpu.memory_space<vmem>>, vector<32x128xf32>
    %cst_18 = arith.constant dense<0.000000e+00> : vector<8x128xf32>
    %41 = tpu.matmul %35, %40, %cst_18 {dimension_numbers = #tpu.dot_dimension_numbers<[1], [0], [0], [1], [0, 0, 1, 1], [], []>} : vector<8x32xf32>, vector<32x128xf32>, vector<8x128xf32> -> vector<8x128xf32>
    %42 = arith.addf %39, %41 : vector<8x128xf32>
    %43 = arith.negf %42 : vector<8x128xf32>
    %44 = math.exp %43 : vector<8x128xf32>
    %cst_19 = arith.constant 1.000000e+00 : f32
    %45 = vector.broadcast %cst_19 : f32 to vector<8x128xf32>
    %46 = arith.addf %45, %44 : vector<8x128xf32>
    %47 = arith.divf %45, %46 : vector<8x128xf32>
    %48 = math.tanh %42 : vector<8x128xf32>
    %49 = vector.extract_strided_slice %47 {offsets = [0, 0], sizes = [8, 32], strides = [1, 1]} : vector<8x128xf32> to vector<8x32xf32>
    %50 = vector.extract_strided_slice %47 {offsets = [0, 32], sizes = [8, 32], strides = [1, 1]} : vector<8x128xf32> to vector<8x32xf32>
    %51 = vector.extract_strided_slice %48 {offsets = [0, 64], sizes = [8, 32], strides = [1, 1]} : vector<8x128xf32> to vector<8x32xf32>
    %52 = vector.extract_strided_slice %47 {offsets = [0, 96], sizes = [8, 32], strides = [1, 1]} : vector<8x128xf32> to vector<8x32xf32>
    %53 = arith.mulf %50, %33 : vector<8x32xf32>
    %54 = arith.mulf %49, %51 : vector<8x32xf32>
    %55 = arith.addf %53, %54 : vector<8x32xf32>
    %56 = math.tanh %55 : vector<8x32xf32>
    %57 = arith.mulf %52, %56 : vector<8x32xf32>
    %c2_i32 = arith.constant 2 : i32
    %c8_i32_20 = arith.constant 8 : i32
    %58 = arith.muli %c2_i32, %c8_i32_20 : i32
    %59 = tpu.assume_multiple %58, 8 : i32
    %60 = arith.index_cast %59 : i32 to index
    %c0_21 = arith.constant 0 : index
    %61 = vector.load %arg7[%60, %c0_21] : memref<64x128xf32, #tpu.memory_space<vmem>>, vector<8x128xf32>
    %c0_22 = arith.constant 0 : index
    %c0_23 = arith.constant 0 : index
    %62 = vector.load %arg2[%c0_22, %c0_23] : memref<32x128xf32, #tpu.memory_space<vmem>>, vector<32x128xf32>
    %cst_24 = arith.constant dense<0.000000e+00> : vector<8x128xf32>
    %63 = tpu.matmul %57, %62, %cst_24 {dimension_numbers = #tpu.dot_dimension_numbers<[1], [0], [0], [1], [0, 0, 1, 1], [], []>} : vector<8x32xf32>, vector<32x128xf32>, vector<8x128xf32> -> vector<8x128xf32>
    %64 = arith.addf %61, %63 : vector<8x128xf32>
    %65 = arith.negf %64 : vector<8x128xf32>
    %66 = math.exp %65 : vector<8x128xf32>
    %cst_25 = arith.constant 1.000000e+00 : f32
    %67 = vector.broadcast %cst_25 : f32 to vector<8x128xf32>
    %68 = arith.addf %67, %66 : vector<8x128xf32>
    %69 = arith.divf %67, %68 : vector<8x128xf32>
    %70 = math.tanh %64 : vector<8x128xf32>
    %71 = vector.extract_strided_slice %69 {offsets = [0, 0], sizes = [8, 32], strides = [1, 1]} : vector<8x128xf32> to vector<8x32xf32>
    %72 = vector.extract_strided_slice %69 {offsets = [0, 32], sizes = [8, 32], strides = [1, 1]} : vector<8x128xf32> to vector<8x32xf32>
    %73 = vector.extract_strided_slice %70 {offsets = [0, 64], sizes = [8, 32], strides = [1, 1]} : vector<8x128xf32> to vector<8x32xf32>
    %74 = vector.extract_strided_slice %69 {offsets = [0, 96], sizes = [8, 32], strides = [1, 1]} : vector<8x128xf32> to vector<8x32xf32>
    %75 = arith.mulf %72, %55 : vector<8x32xf32>
    %76 = arith.mulf %71, %73 : vector<8x32xf32>
    %77 = arith.addf %75, %76 : vector<8x32xf32>
    %78 = math.tanh %77 : vector<8x32xf32>
    %79 = arith.mulf %74, %78 : vector<8x32xf32>
    %c3_i32 = arith.constant 3 : i32
    %c8_i32_26 = arith.constant 8 : i32
    %80 = arith.muli %c3_i32, %c8_i32_26 : i32
    %81 = tpu.assume_multiple %80, 8 : i32
    %82 = arith.index_cast %81 : i32 to index
    %c0_27 = arith.constant 0 : index
    %83 = vector.load %arg7[%82, %c0_27] : memref<64x128xf32, #tpu.memory_space<vmem>>, vector<8x128xf32>
    %c0_28 = arith.constant 0 : index
    %c0_29 = arith.constant 0 : index
    %84 = vector.load %arg2[%c0_28, %c0_29] : memref<32x128xf32, #tpu.memory_space<vmem>>, vector<32x128xf32>
    %cst_30 = arith.constant dense<0.000000e+00> : vector<8x128xf32>
    %85 = tpu.matmul %79, %84, %cst_30 {dimension_numbers = #tpu.dot_dimension_numbers<[1], [0], [0], [1], [0, 0, 1, 1], [], []>} : vector<8x32xf32>, vector<32x128xf32>, vector<8x128xf32> -> vector<8x128xf32>
    %86 = arith.addf %83, %85 : vector<8x128xf32>
    %87 = arith.negf %86 : vector<8x128xf32>
    %88 = math.exp %87 : vector<8x128xf32>
    %cst_31 = arith.constant 1.000000e+00 : f32
    %89 = vector.broadcast %cst_31 : f32 to vector<8x128xf32>
    %90 = arith.addf %89, %88 : vector<8x128xf32>
    %91 = arith.divf %89, %90 : vector<8x128xf32>
    %92 = math.tanh %86 : vector<8x128xf32>
    %93 = vector.extract_strided_slice %91 {offsets = [0, 0], sizes = [8, 32], strides = [1, 1]} : vector<8x128xf32> to vector<8x32xf32>
    %94 = vector.extract_strided_slice %91 {offsets = [0, 32], sizes = [8, 32], strides = [1, 1]} : vector<8x128xf32> to vector<8x32xf32>
    %95 = vector.extract_strided_slice %92 {offsets = [0, 64], sizes = [8, 32], strides = [1, 1]} : vector<8x128xf32> to vector<8x32xf32>
    %96 = vector.extract_strided_slice %91 {offsets = [0, 96], sizes = [8, 32], strides = [1, 1]} : vector<8x128xf32> to vector<8x32xf32>
    %97 = arith.mulf %94, %77 : vector<8x32xf32>
    %98 = arith.mulf %93, %95 : vector<8x32xf32>
    %99 = arith.addf %97, %98 : vector<8x32xf32>
    %100 = math.tanh %99 : vector<8x32xf32>
    %101 = arith.mulf %96, %100 : vector<8x32xf32>
    %c4_i32 = arith.constant 4 : i32
    %c8_i32_32 = arith.constant 8 : i32
    %102 = arith.muli %c4_i32, %c8_i32_32 : i32
    %103 = tpu.assume_multiple %102, 8 : i32
    %104 = arith.index_cast %103 : i32 to index
    %c0_33 = arith.constant 0 : index
    %105 = vector.load %arg7[%104, %c0_33] : memref<64x128xf32, #tpu.memory_space<vmem>>, vector<8x128xf32>
    %c0_34 = arith.constant 0 : index
    %c0_35 = arith.constant 0 : index
    %106 = vector.load %arg2[%c0_34, %c0_35] : memref<32x128xf32, #tpu.memory_space<vmem>>, vector<32x128xf32>
    %cst_36 = arith.constant dense<0.000000e+00> : vector<8x128xf32>
    %107 = tpu.matmul %101, %106, %cst_36 {dimension_numbers = #tpu.dot_dimension_numbers<[1], [0], [0], [1], [0, 0, 1, 1], [], []>} : vector<8x32xf32>, vector<32x128xf32>, vector<8x128xf32> -> vector<8x128xf32>
    %108 = arith.addf %105, %107 : vector<8x128xf32>
    %109 = arith.negf %108 : vector<8x128xf32>
    %110 = math.exp %109 : vector<8x128xf32>
    %cst_37 = arith.constant 1.000000e+00 : f32
    %111 = vector.broadcast %cst_37 : f32 to vector<8x128xf32>
    %112 = arith.addf %111, %110 : vector<8x128xf32>
    %113 = arith.divf %111, %112 : vector<8x128xf32>
    %114 = math.tanh %108 : vector<8x128xf32>
    %115 = vector.extract_strided_slice %113 {offsets = [0, 0], sizes = [8, 32], strides = [1, 1]} : vector<8x128xf32> to vector<8x32xf32>
    %116 = vector.extract_strided_slice %113 {offsets = [0, 32], sizes = [8, 32], strides = [1, 1]} : vector<8x128xf32> to vector<8x32xf32>
    %117 = vector.extract_strided_slice %114 {offsets = [0, 64], sizes = [8, 32], strides = [1, 1]} : vector<8x128xf32> to vector<8x32xf32>
    %118 = vector.extract_strided_slice %113 {offsets = [0, 96], sizes = [8, 32], strides = [1, 1]} : vector<8x128xf32> to vector<8x32xf32>
    %119 = arith.mulf %116, %99 : vector<8x32xf32>
    %120 = arith.mulf %115, %117 : vector<8x32xf32>
    %121 = arith.addf %119, %120 : vector<8x32xf32>
    %122 = math.tanh %121 : vector<8x32xf32>
    %123 = arith.mulf %118, %122 : vector<8x32xf32>
    %c5_i32 = arith.constant 5 : i32
    %c8_i32_38 = arith.constant 8 : i32
    %124 = arith.muli %c5_i32, %c8_i32_38 : i32
    %125 = tpu.assume_multiple %124, 8 : i32
    %126 = arith.index_cast %125 : i32 to index
    %c0_39 = arith.constant 0 : index
    %127 = vector.load %arg7[%126, %c0_39] : memref<64x128xf32, #tpu.memory_space<vmem>>, vector<8x128xf32>
    %c0_40 = arith.constant 0 : index
    %c0_41 = arith.constant 0 : index
    %128 = vector.load %arg2[%c0_40, %c0_41] : memref<32x128xf32, #tpu.memory_space<vmem>>, vector<32x128xf32>
    %cst_42 = arith.constant dense<0.000000e+00> : vector<8x128xf32>
    %129 = tpu.matmul %123, %128, %cst_42 {dimension_numbers = #tpu.dot_dimension_numbers<[1], [0], [0], [1], [0, 0, 1, 1], [], []>} : vector<8x32xf32>, vector<32x128xf32>, vector<8x128xf32> -> vector<8x128xf32>
    %130 = arith.addf %127, %129 : vector<8x128xf32>
    %131 = arith.negf %130 : vector<8x128xf32>
    %132 = math.exp %131 : vector<8x128xf32>
    %cst_43 = arith.constant 1.000000e+00 : f32
    %133 = vector.broadcast %cst_43 : f32 to vector<8x128xf32>
    %134 = arith.addf %133, %132 : vector<8x128xf32>
    %135 = arith.divf %133, %134 : vector<8x128xf32>
    %136 = math.tanh %130 : vector<8x128xf32>
    %137 = vector.extract_strided_slice %135 {offsets = [0, 0], sizes = [8, 32], strides = [1, 1]} : vector<8x128xf32> to vector<8x32xf32>
    %138 = vector.extract_strided_slice %135 {offsets = [0, 32], sizes = [8, 32], strides = [1, 1]} : vector<8x128xf32> to vector<8x32xf32>
    %139 = vector.extract_strided_slice %136 {offsets = [0, 64], sizes = [8, 32], strides = [1, 1]} : vector<8x128xf32> to vector<8x32xf32>
    %140 = vector.extract_strided_slice %135 {offsets = [0, 96], sizes = [8, 32], strides = [1, 1]} : vector<8x128xf32> to vector<8x32xf32>
    %141 = arith.mulf %138, %121 : vector<8x32xf32>
    %142 = arith.mulf %137, %139 : vector<8x32xf32>
    %143 = arith.addf %141, %142 : vector<8x32xf32>
    %144 = math.tanh %143 : vector<8x32xf32>
    %145 = arith.mulf %140, %144 : vector<8x32xf32>
    %c6_i32 = arith.constant 6 : i32
    %c8_i32_44 = arith.constant 8 : i32
    %146 = arith.muli %c6_i32, %c8_i32_44 : i32
    %147 = tpu.assume_multiple %146, 8 : i32
    %148 = arith.index_cast %147 : i32 to index
    %c0_45 = arith.constant 0 : index
    %149 = vector.load %arg7[%148, %c0_45] : memref<64x128xf32, #tpu.memory_space<vmem>>, vector<8x128xf32>
    %c0_46 = arith.constant 0 : index
    %c0_47 = arith.constant 0 : index
    %150 = vector.load %arg2[%c0_46, %c0_47] : memref<32x128xf32, #tpu.memory_space<vmem>>, vector<32x128xf32>
    %cst_48 = arith.constant dense<0.000000e+00> : vector<8x128xf32>
    %151 = tpu.matmul %145, %150, %cst_48 {dimension_numbers = #tpu.dot_dimension_numbers<[1], [0], [0], [1], [0, 0, 1, 1], [], []>} : vector<8x32xf32>, vector<32x128xf32>, vector<8x128xf32> -> vector<8x128xf32>
    %152 = arith.addf %149, %151 : vector<8x128xf32>
    %153 = arith.negf %152 : vector<8x128xf32>
    %154 = math.exp %153 : vector<8x128xf32>
    %cst_49 = arith.constant 1.000000e+00 : f32
    %155 = vector.broadcast %cst_49 : f32 to vector<8x128xf32>
    %156 = arith.addf %155, %154 : vector<8x128xf32>
    %157 = arith.divf %155, %156 : vector<8x128xf32>
    %158 = math.tanh %152 : vector<8x128xf32>
    %159 = vector.extract_strided_slice %157 {offsets = [0, 0], sizes = [8, 32], strides = [1, 1]} : vector<8x128xf32> to vector<8x32xf32>
    %160 = vector.extract_strided_slice %157 {offsets = [0, 32], sizes = [8, 32], strides = [1, 1]} : vector<8x128xf32> to vector<8x32xf32>
    %161 = vector.extract_strided_slice %158 {offsets = [0, 64], sizes = [8, 32], strides = [1, 1]} : vector<8x128xf32> to vector<8x32xf32>
    %162 = vector.extract_strided_slice %157 {offsets = [0, 96], sizes = [8, 32], strides = [1, 1]} : vector<8x128xf32> to vector<8x32xf32>
    %163 = arith.mulf %160, %143 : vector<8x32xf32>
    %164 = arith.mulf %159, %161 : vector<8x32xf32>
    %165 = arith.addf %163, %164 : vector<8x32xf32>
    %166 = math.tanh %165 : vector<8x32xf32>
    %167 = arith.mulf %162, %166 : vector<8x32xf32>
    %c7_i32 = arith.constant 7 : i32
    %c8_i32_50 = arith.constant 8 : i32
    %168 = arith.muli %c7_i32, %c8_i32_50 : i32
    %169 = tpu.assume_multiple %168, 8 : i32
    %170 = arith.index_cast %169 : i32 to index
    %c0_51 = arith.constant 0 : index
    %171 = vector.load %arg7[%170, %c0_51] : memref<64x128xf32, #tpu.memory_space<vmem>>, vector<8x128xf32>
    %c0_52 = arith.constant 0 : index
    %c0_53 = arith.constant 0 : index
    %172 = vector.load %arg2[%c0_52, %c0_53] : memref<32x128xf32, #tpu.memory_space<vmem>>, vector<32x128xf32>
    %cst_54 = arith.constant dense<0.000000e+00> : vector<8x128xf32>
    %173 = tpu.matmul %167, %172, %cst_54 {dimension_numbers = #tpu.dot_dimension_numbers<[1], [0], [0], [1], [0, 0, 1, 1], [], []>} : vector<8x32xf32>, vector<32x128xf32>, vector<8x128xf32> -> vector<8x128xf32>
    %174 = arith.addf %171, %173 : vector<8x128xf32>
    %175 = arith.negf %174 : vector<8x128xf32>
    %176 = math.exp %175 : vector<8x128xf32>
    %cst_55 = arith.constant 1.000000e+00 : f32
    %177 = vector.broadcast %cst_55 : f32 to vector<8x128xf32>
    %178 = arith.addf %177, %176 : vector<8x128xf32>
    %179 = arith.divf %177, %178 : vector<8x128xf32>
    %180 = math.tanh %174 : vector<8x128xf32>
    %181 = vector.extract_strided_slice %179 {offsets = [0, 0], sizes = [8, 32], strides = [1, 1]} : vector<8x128xf32> to vector<8x32xf32>
    %182 = vector.extract_strided_slice %179 {offsets = [0, 32], sizes = [8, 32], strides = [1, 1]} : vector<8x128xf32> to vector<8x32xf32>
    %183 = vector.extract_strided_slice %180 {offsets = [0, 64], sizes = [8, 32], strides = [1, 1]} : vector<8x128xf32> to vector<8x32xf32>
    %184 = vector.extract_strided_slice %179 {offsets = [0, 96], sizes = [8, 32], strides = [1, 1]} : vector<8x128xf32> to vector<8x32xf32>
    %185 = arith.mulf %182, %165 : vector<8x32xf32>
    %186 = arith.mulf %181, %183 : vector<8x32xf32>
    %187 = arith.addf %185, %186 : vector<8x32xf32>
    %188 = math.tanh %187 : vector<8x32xf32>
    %189 = arith.mulf %184, %188 : vector<8x32xf32>
    %c8_i32_56 = arith.constant 8 : i32
    %c0_57 = arith.constant 0 : index
    %c0_58 = arith.constant 0 : index
    %190 = vector.load %arg4[%c0_57, %c0_58] : memref<32x128xf32, #tpu.memory_space<vmem>>, vector<32x128xf32>
    %cst_59 = arith.constant dense<0.000000e+00> : vector<8x128xf32>
    %191 = tpu.matmul %189, %190, %cst_59 {dimension_numbers = #tpu.dot_dimension_numbers<[1], [0], [0], [1], [0, 0, 1, 1], [], []>} : vector<8x32xf32>, vector<32x128xf32>, vector<8x128xf32> -> vector<8x128xf32>
    %c0_60 = arith.constant 0 : index
    %c0_61 = arith.constant 0 : index
    %192 = vector.load %arg5[%c0_60, %c0_61] : memref<1x128xf32, #tpu.memory_space<vmem>>, vector<1x128xf32>
    %193 = vector.broadcast %192 : vector<1x128xf32> to vector<8x128xf32>
    %194 = arith.addf %191, %193 : vector<8x128xf32>
    %c0_62 = arith.constant 0 : index
    %c0_63 = arith.constant 0 : index
    %195 = vector.load %arg6[%c0_62, %c0_63] : memref<8x128xf32, #tpu.memory_space<vmem>>, vector<8x128xf32>
    tpu.vector_store %arg6[%c0_62, %c0_63], %194 {strides = array<i32>} : memref<8x128xf32, #tpu.memory_space<vmem>>, vector<8x128xf32>,
    return
  }
}

</mosaic_0001>

<llo_original>
// kernel: highest_number_lstm_forward.1
$region0: #{highest_number_lstm_forward.1}
  #allocation0 [shape = 'u32[]', space=smem, size = 0x4, offset = 0x4, fixed_abs, tag = 'smem constant byte address 0x4 - core index']
  #allocation1 [shape = 'u32[144,128]{1,0:T(1,128)}', space=vmem, size = 0x12000, scoped, tag = 'internal scratch']
  #allocation2 [shape = 'f32[64,128]{1,0:T(8,128)}', space=vmem, size = 0x8000, scoped, tag = 'scratch operand']
  %s0 = inlined_call_operand.vmem [shape: s32[64,1], index: 0, kind: input, shape index: {}]
  %s1 = inlined_call_operand.hbm [shape: f32[128,128], index: 1, kind: input, shape index: {}]
  %s2 = inlined_call_operand.vmem [shape: f32[32,128], index: 2, kind: input, shape index: {}]
  %s3 = inlined_call_operand.vmem [shape: f32[1,128], index: 3, kind: input, shape index: {}]
  %s4 = inlined_call_operand.vmem [shape: f32[32,128], index: 4, kind: input, shape index: {}]
  %s5 = inlined_call_operand.vmem [shape: f32[1,128], index: 5, kind: input, shape index: {}]
  %s6 = inlined_call_operand.vmem [shape: f32[8,128], index: 6, kind: output, shape index: {}]
  %s7 = sld [smem:[#allocation0]]
  $region38: #{highest_number_lstm_forward.1} parent=0
    _
  %s9 = ssub.s32 1, %s7
  %s10 = scalar_select 0, %s9, %s7
  $region1: #{highest_number_lstm_forward.1} parent=0
    #allocation3 [shape = 'u8[65536]{0}', space=vmem, size = 0x10000, scoped, tag = 'input window, operand 1, single buffered']
    #allocation4 [shape = 's32[1]{0}', space=sflag, size = 0x4, scoped, tag = 'scoped memory for highest_number_lstm_forward.1']
    %11 = vsyncpa [#allocation4], 0
    // Predicated region
    $region2: #{highest_number_lstm_forward.1} parent=1 // pred_check
      _
    $region3: #{highest_number_lstm_forward.1} parent=1 // pred_check_branch
      %13 = sbr.rel (0) target = $region5
    $region4: #{highest_number_lstm_forward.1} parent=1 // pred_region
      _
    $region5: #{highest_number_lstm_forward.1} parent=1 // pred_fallthru
      _
    // Predicated region
    $region6: #{highest_number_lstm_forward.1} parent=1 // pred_check
      _
    $region7: #{highest_number_lstm_forward.1} parent=1 // pred_check_branch
      %15 = sbr.rel (0) target = $region9
    $region8: #{highest_number_lstm_forward.1} parent=1 // pred_region
      %s17 = ssub.s32 2048, 2048
      %18 = vsyncadd [#allocation4], %s17
      %s19 = sshll.u32 [#allocation3], 4
      %s20 = int_to_ptr.vmem [resolvable:$true] %s19
      %25 = dma.hbm_to_vmem [thread:$0]  %s1, 2048, %s20, [#allocation4], 128, 128, 8
    $region9: #{highest_number_lstm_forward.1} parent=1 // pred_fallthru
      _
    // Predicated region
    $region10: #{highest_number_lstm_forward.1} parent=1 // pred_check
      _
    $region11: #{highest_number_lstm_forward.1} parent=1 // pred_check_branch
      %27 = sbr.rel (0) target = $region13
    $region12: #{highest_number_lstm_forward.1} parent=1 // pred_region
      _
    $region13: #{highest_number_lstm_forward.1} parent=1 // pred_fallthru
      _
    // Predicated region
    $region14: #{highest_number_lstm_forward.1} parent=1 // pred_check
      _
    $region15: #{highest_number_lstm_forward.1} parent=1 // pred_check_branch
      %29 = sbr.rel (0) target = $region17
    $region16: #{highest_number_lstm_forward.1} parent=1 // pred_region
      _
    $region17: #{highest_number_lstm_forward.1} parent=1 // pred_fallthru
      _
    // Predicated region
    $region18: #{highest_number_lstm_forward.1} parent=1 // pred_check
      _
    $region19: #{highest_number_lstm_forward.1} parent=1 // pred_check_branch
      %31 = sbr.rel (0) target = $region21
    $region20: #{highest_number_lstm_forward.1} parent=1 // pred_region
      _
    $region21: #{highest_number_lstm_forward.1} parent=1 // pred_fallthru
      _
    // Predicated region
    $region22: #{highest_number_lstm_forward.1} parent=1 // pred_check
      _
    $region23: #{highest_number_lstm_forward.1} parent=1 // pred_check_branch
      %33 = sbr.rel (0) target = $region25
    $region24: #{highest_number_lstm_forward.1} parent=1 // pred_region
      _
    $region25: #{highest_number_lstm_forward.1} parent=1 // pred_fallthru
      _
    // Predicated region
    $region26: #{highest_number_lstm_forward.1} parent=1 // pred_check
      _
    $region27: #{highest_number_lstm_forward.1} parent=1 // pred_check_branch
      %35 = sbr.rel (0) target = $region29
    $region28: #{highest_number_lstm_forward.1} parent=1 // pred_region
      %36 = dma.done [#allocation4], 2048
    $region29: #{highest_number_lstm_forward.1} parent=1 // pred_fallthru
      _
    %v37 = vld [vmem:[%s0] sm:$0xff]
    %v38 = vld [vmem:[%s0 + $0x8] sm:$0xff]
    %v39 = vld [vmem:[%s0 + $0x10] sm:$0xff]
    %v40 = vld [vmem:[%s0 + $0x18] sm:$0xff]
    %v41 = vld [vmem:[%s0 + $0x20] sm:$0xff]
    %v42 = vld [vmem:[%s0 + $0x28] sm:$0xff]
    %v43 = vld [vmem:[%s0 + $0x30] sm:$0xff]
    %v44 = vld [vmem:[%s0 + $0x38] sm:$0xff]
    %v45 = vlaneseq
    %v46 = vand.u32 %v45, 127
    %47 = vset.pattern.permute.xlu0 0
    %48 = vperm.xlu0 %47, %v37
    %v49 = vpop.permute.xlu0 %48
    %50 = vset.pattern.permute.xlu0 0
    %51 = vperm.xlu0 %50, %v38
    %v52 = vpop.permute.xlu0 %51
    %53 = vset.pattern.permute.xlu0 0
    %54 = vperm.xlu0 %53, %v39
    %v55 = vpop.permute.xlu0 %54
    %56 = vset.pattern.permute.xlu0 0
    %57 = vperm.xlu0 %56, %v40
    %v58 = vpop.permute.xlu0 %57
    %59 = vset.pattern.permute.xlu0 0
    %60 = vperm.xlu0 %59, %v41
    %v61 = vpop.permute.xlu0 %60
    %62 = vset.pattern.permute.xlu0 0
    %63 = vperm.xlu0 %62, %v42
    %v64 = vpop.permute.xlu0 %63
    %65 = vset.pattern.permute.xlu0 0
    %66 = vperm.xlu0 %65, %v43
    %v67 = vpop.permute.xlu0 %66
    %68 = vset.pattern.permute.xlu0 0
    %69 = vperm.xlu0 %68, %v44
    %v70 = vpop.permute.xlu0 %69
    %vm71 = vcmp.eq.s32.totalorder %v49, %v46
    %vm72 = vcmp.eq.s32.totalorder %v52, %v46
    %vm73 = vcmp.eq.s32.totalorder %v55, %v46
    %vm74 = vcmp.eq.s32.totalorder %v58, %v46
    %vm75 = vcmp.eq.s32.totalorder %v61, %v46
    %vm76 = vcmp.eq.s32.totalorder %v64, %v46
    %vm77 = vcmp.eq.s32.totalorder %v67, %v46
    %vm78 = vcmp.eq.s32.totalorder %v70, %v46
    %v79 = vsel %vm71, 1, 0
    %v80 = vsel %vm72, 1, 0
    %v81 = vsel %vm73, 1, 0
    %v82 = vsel %vm74, 1, 0
    %v83 = vsel %vm75, 1, 0
    %v84 = vsel %vm76, 1, 0
    %v85 = vsel %vm77, 1, 0
    %v86 = vsel %vm78, 1, 0
    %v87 = vcvt.s32.f32 %v79
    %v88 = vcvt.s32.f32 %v80
    %v89 = vcvt.s32.f32 %v81
    %v90 = vcvt.s32.f32 %v82
    %v91 = vcvt.s32.f32 %v83
    %v92 = vcvt.s32.f32 %v84
    %v93 = vcvt.s32.f32 %v85
    %v94 = vcvt.s32.f32 %v86
    %v95 = vld [vmem:[#allocation3] sm:$0xff]
    %v96 = vld [vmem:[#allocation3 + $0x8] sm:$0xff]
    %v97 = vld [vmem:[#allocation3 + $0x10] sm:$0xff]
    %v98 = vld [vmem:[#allocation3 + $0x18] sm:$0xff]
    %v99 = vld [vmem:[#allocation3 + $0x20] sm:$0xff]
    %v100 = vld [vmem:[#allocation3 + $0x28] sm:$0xff]
    %v101 = vld [vmem:[#allocation3 + $0x30] sm:$0xff]
    %v102 = vld [vmem:[#allocation3 + $0x38] sm:$0xff]
    %v103 = vld [vmem:[#allocation3 + $0x40] sm:$0xff]
    %v104 = vld [vmem:[#allocation3 + $0x48] sm:$0xff]
    %v105 = vld [vmem:[#allocation3 + $0x50] sm:$0xff]
    %v106 = vld [vmem:[#allocation3 + $0x58] sm:$0xff]
    %v107 = vld [vmem:[#allocation3 + $0x60] sm:$0xff]
    %v108 = vld [vmem:[#allocation3 + $0x68] sm:$0xff]
    %v109 = vld [vmem:[#allocation3 + $0x70] sm:$0xff]
    %v110 = vld [vmem:[#allocation3 + $0x78] sm:$0xff]
    %v111 = vld [vmem:[%s3] sm:$0x1]
    %v113 = vlaneseq
    %v114 = vshrl.u32 %v113, 7
    %v115 = vsub.s32 0, %v114
    %v116 = vrot.slane %v111, %v115
    %118 = vmatprep.subr.mxu0 0.0
    %119 = vmatpush1.msra.mxu0 %v95
    %120 = vmatprep.subr.mxu0 0.0
    %121 = vmatpush1.msra.mxu0 %v96
    %122 = vmatprep.subr.mxu0 0.0
    %123 = vmatpush1.msra.mxu0 %v97
    %124 = vmatprep.subr.mxu0 0.0
    %125 = vmatpush1.msra.mxu0 %v98
    %126 = vmatprep.subr.mxu0 0.0
    %127 = vmatpush1.msra.mxu0 %v99
    %128 = vmatprep.subr.mxu0 0.0
    %129 = vmatpush1.msra.mxu0 %v100
    %130 = vmatprep.subr.mxu0 0.0
    %131 = vmatpush1.msra.mxu0 %v101
    %132 = vmatprep.subr.mxu0 0.0
    %133 = vmatpush1.msra.mxu0 %v102
    %134 = vmatprep.subr.mxu0 0.0
    %135 = vmatpush1.msra.mxu0 %v103
    %136 = vmatprep.subr.mxu0 0.0
    %137 = vmatpush1.msra.mxu0 %v104
    %138 = vmatprep.subr.mxu0 0.0
    %139 = vmatpush1.msra.mxu0 %v105
    %140 = vmatprep.subr.mxu0 0.0
    %141 = vmatpush1.msra.mxu0 %v106
    %142 = vmatprep.subr.mxu0 0.0
    %143 = vmatpush1.msra.mxu0 %v107
    %144 = vmatprep.subr.mxu0 0.0
    %145 = vmatpush1.msra.mxu0 %v108
    %146 = vmatprep.subr.mxu0 0.0
    %147 = vmatpush1.msra.mxu0 %v109
    %148 = vmatprep.subr.mxu0 0.0
    %149 = vmatpush1.msra.mxu0 %v110
    %150 = vmatprep.subr.mxu0 0.0
    %151 = vmatpush1.msra.mxu0 0.0
    %152 = vmatprep.subr.mxu0 0.0
    %153 = vmatpush1.msra.mxu0 0.0
    %154 = vmatprep.subr.mxu0 0.0
    %155 = vmatpush1.msra.mxu0 0.0
    %156 = vmatprep.subr.mxu0 0.0
    %157 = vmatpush1.msra.mxu0 0.0
    %158 = vmatprep.subr.mxu0 0.0
    %159 = vmatpush1.msra.mxu0 0.0
    %160 = vmatprep.subr.mxu0 0.0
    %161 = vmatpush1.msra.mxu0 0.0
    %162 = vmatprep.subr.mxu0 0.0
    %163 = vmatpush1.msra.mxu0 0.0
    %164 = vmatprep.subr.mxu0 0.0
    %165 = vmatpush1.msra.mxu0 0.0
    %166 = vmatprep.subr.mxu0 0.0
    %167 = vmatpush1.msra.mxu0 0.0
    %168 = vmatprep.subr.mxu0 0.0
    %169 = vmatpush1.msra.mxu0 0.0
    %170 = vmatprep.subr.mxu0 0.0
    %171 = vmatpush1.msra.mxu0 0.0
    %172 = vmatprep.subr.mxu0 0.0
    %173 = vmatpush1.msra.mxu0 0.0
    %174 = vmatprep.subr.mxu0 0.0
    %175 = vmatpush1.msra.mxu0 0.0
    %176 = vmatprep.subr.mxu0 0.0
    %177 = vmatpush1.msra.mxu0 0.0
    %178 = vmatprep.subr.mxu0 0.0
    %179 = vmatpush1.msra.mxu0 0.0
    %180 = vmatprep.subr.mxu0 0.0
    %181 = vmatpush1.msra.mxu0 0.0
    %182 = vmatprep.mubr.f32.mxu0 0.0
    %183 = vmatmul.mubr.f32.gmra.mrb[0].mxu0 %v87
    %v184 = vpop.f32.mrb[0].mxu0
    %v185 = vadd.f32 %v116, %v184
    %v186 = vpop.f32.mrb[0].mxu0
    %187 = vmatprep.mubr.f32.mxu0 0.0
    %188 = vmatmul.mubr.f32.gmra.mrb[0].mxu0 %v88
    %v189 = vpop.f32.mrb[0].mxu0
    %v190 = vadd.f32 %v116, %v189
    %v191 = vpop.f32.mrb[0].mxu0
    %192 = vmatprep.mubr.f32.mxu0 0.0
    %193 = vmatmul.mubr.f32.gmra.mrb[0].mxu0 %v89
    %v194 = vpop.f32.mrb[0].mxu0
    %v195 = vadd.f32 %v116, %v194
    %v196 = vpop.f32.mrb[0].mxu0
    %197 = vmatprep.mubr.f32.mxu0 0.0
    %198 = vmatmul.mubr.f32.gmra.mrb[0].mxu0 %v90
    %v199 = vpop.f32.mrb[0].mxu0
    %v200 = vadd.f32 %v116, %v199
    %v201 = vpop.f32.mrb[0].mxu0
    %202 = vmatprep.mubr.f32.mxu0 0.0
    %203 = vmatmul.mubr.f32.gmra.mrb[0].mxu0 %v91
    %v204 = vpop.f32.mrb[0].mxu0
    %v205 = vadd.f32 %v116, %v204
    %v206 = vpop.f32.mrb[0].mxu0
    %207 = vmatprep.mubr.f32.mxu0 0.0
    %208 = vmatmul.mubr.f32.gmra.mrb[0].mxu0 %v92
    %v209 = vpop.f32.mrb[0].mxu0
    %v210 = vadd.f32 %v116, %v209
    %v211 = vpop.f32.mrb[0].mxu0
    %212 = vmatprep.mubr.f32.mxu0 0.0
    %213 = vmatmul.mubr.f32.gmra.mrb[0].mxu0 %v93
    %v214 = vpop.f32.mrb[0].mxu0
    %v215 = vadd.f32 %v116, %v214
    %v216 = vpop.f32.mrb[0].mxu0
    %217 = vmatprep.mubr.f32.mxu0 0.0
    %218 = vmatmul.mubr.f32.gmra.mrb[0].mxu0 %v94
    %v219 = vpop.f32.mrb[0].mxu0
    %v220 = vadd.f32 %v116, %v219
    %v221 = vpop.f32.mrb[0].mxu0
    %222 = vdwg.mxu0
    %223 = vst [vmem:[#allocation2] sm:$0xff] %v185
    %224 = vst [vmem:[#allocation2 + $0x8] sm:$0xff] %v190
    %225 = vst [vmem:[#allocation2 + $0x10] sm:$0xff] %v195
    %226 = vst [vmem:[#allocation2 + $0x18] sm:$0xff] %v200
    %227 = vst [vmem:[#allocation2 + $0x20] sm:$0xff] %v205
    %228 = vst [vmem:[#allocation2 + $0x28] sm:$0xff] %v210
    %229 = vst [vmem:[#allocation2 + $0x30] sm:$0xff] %v215
    %230 = vst [vmem:[#allocation2 + $0x38] sm:$0xff] %v220
    %v231 = vld [vmem:[#allocation2] sm:$0xff]
    %v232 = vld [vmem:[%s2] sm:$0xff]
    %v233 = vld [vmem:[%s2 + $0x8] sm:$0xff]
    %v234 = vld [vmem:[%s2 + $0x10] sm:$0xff]
    %v235 = vld [vmem:[%s2 + $0x18] sm:$0xff]
    %vm236 = vcmask 261120
    %v238 = vsel %vm236, 0.0, 0
    %240 = vmatprep.subr.mxu0 0.0
    %241 = vmatpush1.msra.mxu0 %v232
    %242 = vmatprep.subr.mxu0 0.0
    %243 = vmatpush1.msra.mxu0 %v233
    %244 = vmatprep.subr.mxu0 0.0
    %245 = vmatpush1.msra.mxu0 %v234
    %246 = vmatprep.subr.mxu0 0.0
    %247 = vmatpush1.msra.mxu0 %v235
    %248 = vmatprep.subr.mxu0 0.0
    %249 = vmatpush1.msra.mxu0 0.0
    %250 = vmatprep.subr.mxu0 0.0
    %251 = vmatpush1.msra.mxu0 0.0
    %252 = vmatprep.subr.mxu0 0.0
    %253 = vmatpush1.msra.mxu0 0.0
    %254 = vmatprep.subr.mxu0 0.0
    %255 = vmatpush1.msra.mxu0 0.0
    %256 = vmatprep.subr.mxu0 0.0
    %257 = vmatpush1.msra.mxu0 0.0
    %258 = vmatprep.subr.mxu0 0.0
    %259 = vmatpush1.msra.mxu0 0.0
    %260 = vmatprep.subr.mxu0 0.0
    %261 = vmatpush1.msra.mxu0 0.0
    %262 = vmatprep.subr.mxu0 0.0
    %263 = vmatpush1.msra.mxu0 0.0
    %264 = vmatprep.subr.mxu0 0.0
    %265 = vmatpush1.msra.mxu0 0.0
    %266 = vmatprep.subr.mxu0 0.0
    %267 = vmatpush1.msra.mxu0 0.0
    %268 = vmatprep.subr.mxu0 0.0
    %269 = vmatpush1.msra.mxu0 0.0
    %270 = vmatprep.subr.mxu0 0.0
    %271 = vmatpush1.msra.mxu0 0.0
    %272 = vmatprep.subr.mxu0 0.0
    %273 = vmatpush1.msra.mxu0 0.0
    %274 = vmatprep.subr.mxu0 0.0
    %275 = vmatpush1.msra.mxu0 0.0
    %276 = vmatprep.subr.mxu0 0.0
    %277 = vmatpush1.msra.mxu0 0.0
    %278 = vmatprep.subr.mxu0 0.0
    %279 = vmatpush1.msra.mxu0 0.0
    %280 = vmatprep.subr.mxu0 0.0
    %281 = vmatpush1.msra.mxu0 0.0
    %282 = vmatprep.subr.mxu0 0.0
    %283 = vmatpush1.msra.mxu0 0.0
    %284 = vmatprep.subr.mxu0 0.0
    %285 = vmatpush1.msra.mxu0 0.0
    %286 = vmatprep.subr.mxu0 0.0
    %287 = vmatpush1.msra.mxu0 0.0
    %288 = vmatprep.subr.mxu0 0.0
    %289 = vmatpush1.msra.mxu0 0.0
    %290 = vmatprep.subr.mxu0 0.0
    %291 = vmatpush1.msra.mxu0 0.0
    %292 = vmatprep.subr.mxu0 0.0
    %293 = vmatpush1.msra.mxu0 0.0
    %294 = vmatprep.subr.mxu0 0.0
    %295 = vmatpush1.msra.mxu0 0.0
    %296 = vmatprep.subr.mxu0 0.0
    %297 = vmatpush1.msra.mxu0 0.0
    %298 = vmatprep.subr.mxu0 0.0
    %299 = vmatpush1.msra.mxu0 0.0
    %300 = vmatprep.subr.mxu0 0.0
    %301 = vmatpush1.msra.mxu0 0.0
    %302 = vmatprep.subr.mxu0 0.0
    %303 = vmatpush1.msra.mxu0 0.0
    %304 = vmatprep.mubr.f32.mxu0 0.0
    %305 = vmatmul.mubr.f32.gmra.mrb[0].mxu0 %v238
    %v306 = vpop.f32.mrb[0].mxu0
    %v307 = vadd.f32 0.0, %v306
    %v308 = vpop.f32.mrb[0].mxu0
    %309 = vdwg.mxu0
    %v310 = vadd.f32 %v231, %v307
    %v311 = vxor.u32 %v310, 2147483648
    %v312 = vmul.f32 %v311, 1.442695
    %v313 = vpow.pop %v312
    %v314 = vadd.f32 %v313, 1.0
    %v315 = vrcp.pop %v314
    %v316 = vmul.f32 1.0, %v315
    %v317 = vtanh.pop %v310
    %v318 = vmul.f32 %v316, 0.0
    %320 = vrot.lane.b32.xlu0 %v317, 64
    %v321 = vpop.permute.xlu0 %320
    %v323 = vmul.f32 %v316, %v321
    %325 = vrot.lane.b32.xlu0 %v323, 32
    %v326 = vpop.permute.xlu0 %325
    %v328 = vadd.f32 %v318, %v326
    %v329 = vtanh.pop %v328
    %331 = vrot.lane.b32.xlu0 %v329, 64
    %v332 = vpop.permute.xlu0 %331
    %v334 = vmul.f32 %v316, %v332
    %s335 = scalar_lea.vmem [#allocation2], 8
    %v336 = vld [vmem:[%s335] sm:$0xff]
    %338 = vrot.lane.b32.xlu0 %v334, 32
    %v339 = vpop.permute.xlu0 %338
    %v340 = vsel %vm236, %v339, 0
    %342 = vmatprep.subr.mxu0 0.0
    %343 = vmatpush1.msra.mxu0 %v232
    %344 = vmatprep.subr.mxu0 0.0
    %345 = vmatpush1.msra.mxu0 %v233
    %346 = vmatprep.subr.mxu0 0.0
    %347 = vmatpush1.msra.mxu0 %v234
    %348 = vmatprep.subr.mxu0 0.0
    %349 = vmatpush1.msra.mxu0 %v235
    %350 = vmatprep.subr.mxu0 0.0
    %351 = vmatpush1.msra.mxu0 0.0
    %352 = vmatprep.subr.mxu0 0.0
    %353 = vmatpush1.msra.mxu0 0.0
    %354 = vmatprep.subr.mxu0 0.0
    %355 = vmatpush1.msra.mxu0 0.0
    %356 = vmatprep.subr.mxu0 0.0
    %357 = vmatpush1.msra.mxu0 0.0
    %358 = vmatprep.subr.mxu0 0.0
    %359 = vmatpush1.msra.mxu0 0.0
    %360 = vmatprep.subr.mxu0 0.0
    %361 = vmatpush1.msra.mxu0 0.0
    %362 = vmatprep.subr.mxu0 0.0
    %363 = vmatpush1.msra.mxu0 0.0
    %364 = vmatprep.subr.mxu0 0.0
    %365 = vmatpush1.msra.mxu0 0.0
    %366 = vmatprep.subr.mxu0 0.0
    %367 = vmatpush1.msra.mxu0 0.0
    %368 = vmatprep.subr.mxu0 0.0
    %369 = vmatpush1.msra.mxu0 0.0
    %370 = vmatprep.subr.mxu0 0.0
    %371 = vmatpush1.msra.mxu0 0.0
    %372 = vmatprep.subr.mxu0 0.0
    %373 = vmatpush1.msra.mxu0 0.0
    %374 = vmatprep.subr.mxu0 0.0
    %375 = vmatpush1.msra.mxu0 0.0
    %376 = vmatprep.subr.mxu0 0.0
    %377 = vmatpush1.msra.mxu0 0.0
    %378 = vmatprep.subr.mxu0 0.0
    %379 = vmatpush1.msra.mxu0 0.0
    %380 = vmatprep.subr.mxu0 0.0
    %381 = vmatpush1.msra.mxu0 0.0
    %382 = vmatprep.subr.mxu0 0.0
    %383 = vmatpush1.msra.mxu0 0.0
    %384 = vmatprep.subr.mxu0 0.0
    %385 = vmatpush1.msra.mxu0 0.0
    %386 = vmatprep.subr.mxu0 0.0
    %387 = vmatpush1.msra.mxu0 0.0
    %388 = vmatprep.subr.mxu0 0.0
    %389 = vmatpush1.msra.mxu0 0.0
    %390 = vmatprep.subr.mxu0 0.0
    %391 = vmatpush1.msra.mxu0 0.0
    %392 = vmatprep.subr.mxu0 0.0
    %393 = vmatpush1.msra.mxu0 0.0
    %394 = vmatprep.subr.mxu0 0.0
    %395 = vmatpush1.msra.mxu0 0.0
    %396 = vmatprep.subr.mxu0 0.0
    %397 = vmatpush1.msra.mxu0 0.0
    %398 = vmatprep.subr.mxu0 0.0
    %399 = vmatpush1.msra.mxu0 0.0
    %400 = vmatprep.subr.mxu0 0.0
    %401 = vmatpush1.msra.mxu0 0.0
    %402 = vmatprep.subr.mxu0 0.0
    %403 = vmatpush1.msra.mxu0 0.0
    %404 = vmatprep.subr.mxu0 0.0
    %405 = vmatpush1.msra.mxu0 0.0
    %406 = vmatprep.mubr.f32.mxu0 0.0
    %407 = vmatmul.mubr.f32.gmra.mrb[0].mxu0 %v340
    %v408 = vpop.f32.mrb[0].mxu0
    %v409 = vadd.f32 0.0, %v408
    %v410 = vpop.f32.mrb[0].mxu0
    %411 = vdwg.mxu0
    %v412 = vadd.f32 %v336, %v409
    %v413 = vxor.u32 %v412, 2147483648
    %v414 = vmul.f32 %v413, 1.442695
    %v415 = vpow.pop %v414
    %v416 = vadd.f32 %v415, 1.0
    %v417 = vrcp.pop %v416
    %v418 = vmul.f32 1.0, %v417
    %v419 = vtanh.pop %v412
    %v420 = vmul.f32 %v418, %v328
    %422 = vrot.lane.b32.xlu0 %v419, 64
    %v423 = vpop.permute.xlu0 %422
    %v425 = vmul.f32 %v418, %v423
    %427 = vrot.lane.b32.xlu0 %v425, 32
    %v428 = vpop.permute.xlu0 %427
    %v430 = vadd.f32 %v420, %v428
    %v431 = vtanh.pop %v430
    %433 = vrot.lane.b32.xlu0 %v431, 64
    %v434 = vpop.permute.xlu0 %433
    %v436 = vmul.f32 %v418, %v434
    %s437 = scalar_lea.vmem [#allocation2], 16
    %v438 = vld [vmem:[%s437] sm:$0xff]
    %440 = vrot.lane.b32.xlu0 %v436, 32
    %v441 = vpop.permute.xlu0 %440
    %v442 = vsel %vm236, %v441, 0
    %444 = vmatprep.subr.mxu0 0.0
    %445 = vmatpush1.msra.mxu0 %v232
    %446 = vmatprep.subr.mxu0 0.0
    %447 = vmatpush1.msra.mxu0 %v233
    %448 = vmatprep.subr.mxu0 0.0
    %449 = vmatpush1.msra.mxu0 %v234
    %450 = vmatprep.subr.mxu0 0.0
    %451 = vmatpush1.msra.mxu0 %v235
    %452 = vmatprep.subr.mxu0 0.0
    %453 = vmatpush1.msra.mxu0 0.0
    %454 = vmatprep.subr.mxu0 0.0
    %455 = vmatpush1.msra.mxu0 0.0
    %456 = vmatprep.subr.mxu0 0.0
    %457 = vmatpush1.msra.mxu0 0.0
    %458 = vmatprep.subr.mxu0 0.0
    %459 = vmatpush1.msra.mxu0 0.0
    %460 = vmatprep.subr.mxu0 0.0
    %461 = vmatpush1.msra.mxu0 0.0
    %462 = vmatprep.subr.mxu0 0.0
    %463 = vmatpush1.msra.mxu0 0.0
    %464 = vmatprep.subr.mxu0 0.0
    %465 = vmatpush1.msra.mxu0 0.0
    %466 = vmatprep.subr.mxu0 0.0
    %467 = vmatpush1.msra.mxu0 0.0
    %468 = vmatprep.subr.mxu0 0.0
    %469 = vmatpush1.msra.mxu0 0.0
    %470 = vmatprep.subr.mxu0 0.0
    %471 = vmatpush1.msra.mxu0 0.0
    %472 = vmatprep.subr.mxu0 0.0
    %473 = vmatpush1.msra.mxu0 0.0
    %474 = vmatprep.subr.mxu0 0.0
    %475 = vmatpush1.msra.mxu0 0.0
    %476 = vmatprep.subr.mxu0 0.0
    %477 = vmatpush1.msra.mxu0 0.0
    %478 = vmatprep.subr.mxu0 0.0
    %479 = vmatpush1.msra.mxu0 0.0
    %480 = vmatprep.subr.mxu0 0.0
    %481 = vmatpush1.msra.mxu0 0.0
    %482 = vmatprep.subr.mxu0 0.0
    %483 = vmatpush1.msra.mxu0 0.0
    %484 = vmatprep.subr.mxu0 0.0
    %485 = vmatpush1.msra.mxu0 0.0
    %486 = vmatprep.subr.mxu0 0.0
    %487 = vmatpush1.msra.mxu0 0.0
    %488 = vmatprep.subr.mxu0 0.0
    %489 = vmatpush1.msra.mxu0 0.0
    %490 = vmatprep.subr.mxu0 0.0
    %491 = vmatpush1.msra.mxu0 0.0
    %492 = vmatprep.subr.mxu0 0.0
    %493 = vmatpush1.msra.mxu0 0.0
    %494 = vmatprep.subr.mxu0 0.0
    %495 = vmatpush1.msra.mxu0 0.0
    %496 = vmatprep.subr.mxu0 0.0
    %497 = vmatpush1.msra.mxu0 0.0
    %498 = vmatprep.subr.mxu0 0.0
    %499 = vmatpush1.msra.mxu0 0.0
    %500 = vmatprep.subr.mxu0 0.0
    %501 = vmatpush1.msra.mxu0 0.0
    %502 = vmatprep.subr.mxu0 0.0
    %503 = vmatpush1.msra.mxu0 0.0
    %504 = vmatprep.subr.mxu0 0.0
    %505 = vmatpush1.msra.mxu0 0.0
    %506 = vmatprep.subr.mxu0 0.0
    %507 = vmatpush1.msra.mxu0 0.0
    %508 = vmatprep.mubr.f32.mxu0 0.0
    %509 = vmatmul.mubr.f32.gmra.mrb[0].mxu0 %v442
    %v510 = vpop.f32.mrb[0].mxu0
    %v511 = vadd.f32 0.0, %v510
    %v512 = vpop.f32.mrb[0].mxu0
    %513 = vdwg.mxu0
    %v514 = vadd.f32 %v438, %v511
    %v515 = vxor.u32 %v514, 2147483648
    %v516 = vmul.f32 %v515, 1.442695
    %v517 = vpow.pop %v516
    %v518 = vadd.f32 %v517, 1.0
    %v519 = vrcp.pop %v518
    %v520 = vmul.f32 1.0, %v519
    %v521 = vtanh.pop %v514
    %v522 = vmul.f32 %v520, %v430
    %524 = vrot.lane.b32.xlu0 %v521, 64
    %v525 = vpop.permute.xlu0 %524
    %v527 = vmul.f32 %v520, %v525
    %529 = vrot.lane.b32.xlu0 %v527, 32
    %v530 = vpop.permute.xlu0 %529
    %v532 = vadd.f32 %v522, %v530
    %v533 = vtanh.pop %v532
    %535 = vrot.lane.b32.xlu0 %v533, 64
    %v536 = vpop.permute.xlu0 %535
    %v538 = vmul.f32 %v520, %v536
    %s539 = scalar_lea.vmem [#allocation2], 24
    %v540 = vld [vmem:[%s539] sm:$0xff]
    %542 = vrot.lane.b32.xlu0 %v538, 32
    %v543 = vpop.permute.xlu0 %542
    %v544 = vsel %vm236, %v543, 0
    %546 = vmatprep.subr.mxu0 0.0
    %547 = vmatpush1.msra.mxu0 %v232
    %548 = vmatprep.subr.mxu0 0.0
    %549 = vmatpush1.msra.mxu0 %v233
    %550 = vmatprep.subr.mxu0 0.0
    %551 = vmatpush1.msra.mxu0 %v234
    %552 = vmatprep.subr.mxu0 0.0
    %553 = vmatpush1.msra.mxu0 %v235
    %554 = vmatprep.subr.mxu0 0.0
    %555 = vmatpush1.msra.mxu0 0.0
    %556 = vmatprep.subr.mxu0 0.0
    %557 = vmatpush1.msra.mxu0 0.0
    %558 = vmatprep.subr.mxu0 0.0
    %559 = vmatpush1.msra.mxu0 0.0
    %560 = vmatprep.subr.mxu0 0.0
    %561 = vmatpush1.msra.mxu0 0.0
    %562 = vmatprep.subr.mxu0 0.0
    %563 = vmatpush1.msra.mxu0 0.0
    %564 = vmatprep.subr.mxu0 0.0
    %565 = vmatpush1.msra.mxu0 0.0
    %566 = vmatprep.subr.mxu0 0.0
    %567 = vmatpush1.msra.mxu0 0.0
    %568 = vmatprep.subr.mxu0 0.0
    %569 = vmatpush1.msra.mxu0 0.0
    %570 = vmatprep.subr.mxu0 0.0
    %571 = vmatpush1.msra.mxu0 0.0
    %572 = vmatprep.subr.mxu0 0.0
    %573 = vmatpush1.msra.mxu0 0.0
    %574 = vmatprep.subr.mxu0 0.0
    %575 = vmatpush1.msra.mxu0 0.0
    %576 = vmatprep.subr.mxu0 0.0
    %577 = vmatpush1.msra.mxu0 0.0
    %578 = vmatprep.subr.mxu0 0.0
    %579 = vmatpush1.msra.mxu0 0.0
    %580 = vmatprep.subr.mxu0 0.0
    %581 = vmatpush1.msra.mxu0 0.0
    %582 = vmatprep.subr.mxu0 0.0
    %583 = vmatpush1.msra.mxu0 0.0
    %584 = vmatprep.subr.mxu0 0.0
    %585 = vmatpush1.msra.mxu0 0.0
    %586 = vmatprep.subr.mxu0 0.0
    %587 = vmatpush1.msra.mxu0 0.0
    %588 = vmatprep.subr.mxu0 0.0
    %589 = vmatpush1.msra.mxu0 0.0
    %590 = vmatprep.subr.mxu0 0.0
    %591 = vmatpush1.msra.mxu0 0.0
    %592 = vmatprep.subr.mxu0 0.0
    %593 = vmatpush1.msra.mxu0 0.0
    %594 = vmatprep.subr.mxu0 0.0
    %595 = vmatpush1.msra.mxu0 0.0
    %596 = vmatprep.subr.mxu0 0.0
    %597 = vmatpush1.msra.mxu0 0.0
    %598 = vmatprep.subr.mxu0 0.0
    %599 = vmatpush1.msra.mxu0 0.0
    %600 = vmatprep.subr.mxu0 0.0
    %601 = vmatpush1.msra.mxu0 0.0
    %602 = vmatprep.subr.mxu0 0.0
    %603 = vmatpush1.msra.mxu0 0.0
    %604 = vmatprep.subr.mxu0 0.0
    %605 = vmatpush1.msra.mxu0 0.0
    %606 = vmatprep.subr.mxu0 0.0
    %607 = vmatpush1.msra.mxu0 0.0
    %608 = vmatprep.subr.mxu0 0.0
    %609 = vmatpush1.msra.mxu0 0.0
    %610 = vmatprep.mubr.f32.mxu0 0.0
    %611 = vmatmul.mubr.f32.gmra.mrb[0].mxu0 %v544
    %v612 = vpop.f32.mrb[0].mxu0
    %v613 = vadd.f32 0.0, %v612
    %v614 = vpop.f32.mrb[0].mxu0
    %615 = vdwg.mxu0
    %v616 = vadd.f32 %v540, %v613
    %v617 = vxor.u32 %v616, 2147483648
    %v618 = vmul.f32 %v617, 1.442695
    %v619 = vpow.pop %v618
    %v620 = vadd.f32 %v619, 1.0
    %v621 = vrcp.pop %v620
    %v622 = vmul.f32 1.0, %v621
    %v623 = vtanh.pop %v616
    %v624 = vmul.f32 %v622, %v532
    %626 = vrot.lane.b32.xlu0 %v623, 64
    %v627 = vpop.permute.xlu0 %626
    %v629 = vmul.f32 %v622, %v627
    %631 = vrot.lane.b32.xlu0 %v629, 32
    %v632 = vpop.permute.xlu0 %631
    %v634 = vadd.f32 %v624, %v632
    %v635 = vtanh.pop %v634
    %637 = vrot.lane.b32.xlu0 %v635, 64
    %v638 = vpop.permute.xlu0 %637
    %v640 = vmul.f32 %v622, %v638
    %s641 = scalar_lea.vmem [#allocation2], 32
    %v642 = vld [vmem:[%s641] sm:$0xff]
    %644 = vrot.lane.b32.xlu0 %v640, 32
    %v645 = vpop.permute.xlu0 %644
    %v646 = vsel %vm236, %v645, 0
    %648 = vmatprep.subr.mxu0 0.0
    %649 = vmatpush1.msra.mxu0 %v232
    %650 = vmatprep.subr.mxu0 0.0
    %651 = vmatpush1.msra.mxu0 %v233
    %652 = vmatprep.subr.mxu0 0.0
    %653 = vmatpush1.msra.mxu0 %v234
    %654 = vmatprep.subr.mxu0 0.0
    %655 = vmatpush1.msra.mxu0 %v235
    %656 = vmatprep.subr.mxu0 0.0
    %657 = vmatpush1.msra.mxu0 0.0
    %658 = vmatprep.subr.mxu0 0.0
    %659 = vmatpush1.msra.mxu0 0.0
    %660 = vmatprep.subr.mxu0 0.0
    %661 = vmatpush1.msra.mxu0 0.0
    %662 = vmatprep.subr.mxu0 0.0
    %663 = vmatpush1.msra.mxu0 0.0
    %664 = vmatprep.subr.mxu0 0.0
    %665 = vmatpush1.msra.mxu0 0.0
    %666 = vmatprep.subr.mxu0 0.0
    %667 = vmatpush1.msra.mxu0 0.0
    %668 = vmatprep.subr.mxu0 0.0
    %669 = vmatpush1.msra.mxu0 0.0
    %670 = vmatprep.subr.mxu0 0.0
    %671 = vmatpush1.msra.mxu0 0.0
    %672 = vmatprep.subr.mxu0 0.0
    %673 = vmatpush1.msra.mxu0 0.0
    %674 = vmatprep.subr.mxu0 0.0
    %675 = vmatpush1.msra.mxu0 0.0
    %676 = vmatprep.subr.mxu0 0.0
    %677 = vmatpush1.msra.mxu0 0.0
    %678 = vmatprep.subr.mxu0 0.0
    %679 = vmatpush1.msra.mxu0 0.0
    %680 = vmatprep.subr.mxu0 0.0
    %681 = vmatpush1.msra.mxu0 0.0
    %682 = vmatprep.subr.mxu0 0.0
    %683 = vmatpush1.msra.mxu0 0.0
    %684 = vmatprep.subr.mxu0 0.0
    %685 = vmatpush1.msra.mxu0 0.0
    %686 = vmatprep.subr.mxu0 0.0
    %687 = vmatpush1.msra.mxu0 0.0
    %688 = vmatprep.subr.mxu0 0.0
    %689 = vmatpush1.msra.mxu0 0.0
    %690 = vmatprep.subr.mxu0 0.0
    %691 = vmatpush1.msra.mxu0 0.0
    %692 = vmatprep.subr.mxu0 0.0
    %693 = vmatpush1.msra.mxu0 0.0
    %694 = vmatprep.subr.mxu0 0.0
    %695 = vmatpush1.msra.mxu0 0.0
    %696 = vmatprep.subr.mxu0 0.0
    %697 = vmatpush1.msra.mxu0 0.0
    %698 = vmatprep.subr.mxu0 0.0
    %699 = vmatpush1.msra.mxu0 0.0
    %700 = vmatprep.subr.mxu0 0.0
    %701 = vmatpush1.msra.mxu0 0.0
    %702 = vmatprep.subr.mxu0 0.0
    %703 = vmatpush1.msra.mxu0 0.0
    %704 = vmatprep.subr.mxu0 0.0
    %705 = vmatpush1.msra.mxu0 0.0
    %706 = vmatprep.subr.mxu0 0.0
    %707 = vmatpush1.msra.mxu0 0.0
    %708 = vmatprep.subr.mxu0 0.0
    %709 = vmatpush1.msra.mxu0 0.0
    %710 = vmatprep.subr.mxu0 0.0
    %711 = vmatpush1.msra.mxu0 0.0
    %712 = vmatprep.mubr.f32.mxu0 0.0
    %713 = vmatmul.mubr.f32.gmra.mrb[0].mxu0 %v646
    %v714 = vpop.f32.mrb[0].mxu0
    %v715 = vadd.f32 0.0, %v714
    %v716 = vpop.f32.mrb[0].mxu0
    %717 = vdwg.mxu0
    %v718 = vadd.f32 %v642, %v715
    %v719 = vxor.u32 %v718, 2147483648
    %v720 = vmul.f32 %v719, 1.442695
    %v721 = vpow.pop %v720
    %v722 = vadd.f32 %v721, 1.0
    %v723 = vrcp.pop %v722
    %v724 = vmul.f32 1.0, %v723
    %v725 = vtanh.pop %v718
    %v726 = vmul.f32 %v724, %v634
    %728 = vrot.lane.b32.xlu0 %v725, 64
    %v729 = vpop.permute.xlu0 %728
    %v731 = vmul.f32 %v724, %v729
    %733 = vrot.lane.b32.xlu0 %v731, 32
    %v734 = vpop.permute.xlu0 %733
    %v736 = vadd.f32 %v726, %v734
    %v737 = vtanh.pop %v736
    %739 = vrot.lane.b32.xlu0 %v737, 64
    %v740 = vpop.permute.xlu0 %739
    %v742 = vmul.f32 %v724, %v740
    %s743 = scalar_lea.vmem [#allocation2], 40
    %v744 = vld [vmem:[%s743] sm:$0xff]
    %746 = vrot.lane.b32.xlu0 %v742, 32
    %v747 = vpop.permute.xlu0 %746
    %v748 = vsel %vm236, %v747, 0
    %750 = vmatprep.subr.mxu0 0.0
    %751 = vmatpush1.msra.mxu0 %v232
    %752 = vmatprep.subr.mxu0 0.0
    %753 = vmatpush1.msra.mxu0 %v233
    %754 = vmatprep.subr.mxu0 0.0
    %755 = vmatpush1.msra.mxu0 %v234
    %756 = vmatprep.subr.mxu0 0.0
    %757 = vmatpush1.msra.mxu0 %v235
    %758 = vmatprep.subr.mxu0 0.0
    %759 = vmatpush1.msra.mxu0 0.0
    %760 = vmatprep.subr.mxu0 0.0
    %761 = vmatpush1.msra.mxu0 0.0
    %762 = vmatprep.subr.mxu0 0.0
    %763 = vmatpush1.msra.mxu0 0.0
    %764 = vmatprep.subr.mxu0 0.0
    %765 = vmatpush1.msra.mxu0 0.0
    %766 = vmatprep.subr.mxu0 0.0
    %767 = vmatpush1.msra.mxu0 0.0
    %768 = vmatprep.subr.mxu0 0.0
    %769 = vmatpush1.msra.mxu0 0.0
    %770 = vmatprep.subr.mxu0 0.0
    %771 = vmatpush1.msra.mxu0 0.0
    %772 = vmatprep.subr.mxu0 0.0
    %773 = vmatpush1.msra.mxu0 0.0
    %774 = vmatprep.subr.mxu0 0.0
    %775 = vmatpush1.msra.mxu0 0.0
    %776 = vmatprep.subr.mxu0 0.0
    %777 = vmatpush1.msra.mxu0 0.0
    %778 = vmatprep.subr.mxu0 0.0
    %779 = vmatpush1.msra.mxu0 0.0
    %780 = vmatprep.subr.mxu0 0.0
    %781 = vmatpush1.msra.mxu0 0.0
    %782 = vmatprep.subr.mxu0 0.0
    %783 = vmatpush1.msra.mxu0 0.0
    %784 = vmatprep.subr.mxu0 0.0
    %785 = vmatpush1.msra.mxu0 0.0
    %786 = vmatprep.subr.mxu0 0.0
    %787 = vmatpush1.msra.mxu0 0.0
    %788 = vmatprep.subr.mxu0 0.0
    %789 = vmatpush1.msra.mxu0 0.0
    %790 = vmatprep.subr.mxu0 0.0
    %791 = vmatpush1.msra.mxu0 0.0
    %792 = vmatprep.subr.mxu0 0.0
    %793 = vmatpush1.msra.mxu0 0.0
    %794 = vmatprep.subr.mxu0 0.0
    %795 = vmatpush1.msra.mxu0 0.0
    %796 = vmatprep.subr.mxu0 0.0
    %797 = vmatpush1.msra.mxu0 0.0
    %798 = vmatprep.subr.mxu0 0.0
    %799 = vmatpush1.msra.mxu0 0.0
    %800 = vmatprep.subr.mxu0 0.0
    %801 = vmatpush1.msra.mxu0 0.0
    %802 = vmatprep.subr.mxu0 0.0
    %803 = vmatpush1.msra.mxu0 0.0
    %804 = vmatprep.subr.mxu0 0.0
    %805 = vmatpush1.msra.mxu0 0.0
    %806 = vmatprep.subr.mxu0 0.0
    %807 = vmatpush1.msra.mxu0 0.0
    %808 = vmatprep.subr.mxu0 0.0
    %809 = vmatpush1.msra.mxu0 0.0
    %810 = vmatprep.subr.mxu0 0.0
    %811 = vmatpush1.msra.mxu0 0.0
    %812 = vmatprep.subr.mxu0 0.0
    %813 = vmatpush1.msra.mxu0 0.0
    %814 = vmatprep.mubr.f32.mxu0 0.0
    %815 = vmatmul.mubr.f32.gmra.mrb[0].mxu0 %v748
    %v816 = vpop.f32.mrb[0].mxu0
    %v817 = vadd.f32 0.0, %v816
    %v818 = vpop.f32.mrb[0].mxu0
    %819 = vdwg.mxu0
    %v820 = vadd.f32 %v744, %v817
    %v821 = vxor.u32 %v820, 2147483648
    %v822 = vmul.f32 %v821, 1.442695
    %v823 = vpow.pop %v822
    %v824 = vadd.f32 %v823, 1.0
    %v825 = vrcp.pop %v824
    %v826 = vmul.f32 1.0, %v825
    %v827 = vtanh.pop %v820
    %v828 = vmul.f32 %v826, %v736
    %830 = vrot.lane.b32.xlu0 %v827, 64
    %v831 = vpop.permute.xlu0 %830
    %v833 = vmul.f32 %v826, %v831
    %835 = vrot.lane.b32.xlu0 %v833, 32
    %v836 = vpop.permute.xlu0 %835
    %v838 = vadd.f32 %v828, %v836
    %v839 = vtanh.pop %v838
    %841 = vrot.lane.b32.xlu0 %v839, 64
    %v842 = vpop.permute.xlu0 %841
    %v844 = vmul.f32 %v826, %v842
    %s845 = scalar_lea.vmem [#allocation2], 48
    %v846 = vld [vmem:[%s845] sm:$0xff]
    %848 = vrot.lane.b32.xlu0 %v844, 32
    %v849 = vpop.permute.xlu0 %848
    %v850 = vsel %vm236, %v849, 0
    %852 = vmatprep.subr.mxu0 0.0
    %853 = vmatpush1.msra.mxu0 %v232
    %854 = vmatprep.subr.mxu0 0.0
    %855 = vmatpush1.msra.mxu0 %v233
    %856 = vmatprep.subr.mxu0 0.0
    %857 = vmatpush1.msra.mxu0 %v234
    %858 = vmatprep.subr.mxu0 0.0
    %859 = vmatpush1.msra.mxu0 %v235
    %860 = vmatprep.subr.mxu0 0.0
    %861 = vmatpush1.msra.mxu0 0.0
    %862 = vmatprep.subr.mxu0 0.0
    %863 = vmatpush1.msra.mxu0 0.0
    %864 = vmatprep.subr.mxu0 0.0
    %865 = vmatpush1.msra.mxu0 0.0
    %866 = vmatprep.subr.mxu0 0.0
    %867 = vmatpush1.msra.mxu0 0.0
    %868 = vmatprep.subr.mxu0 0.0
    %869 = vmatpush1.msra.mxu0 0.0
    %870 = vmatprep.subr.mxu0 0.0
    %871 = vmatpush1.msra.mxu0 0.0
    %872 = vmatprep.subr.mxu0 0.0
    %873 = vmatpush1.msra.mxu0 0.0
    %874 = vmatprep.subr.mxu0 0.0
    %875 = vmatpush1.msra.mxu0 0.0
    %876 = vmatprep.subr.mxu0 0.0
    %877 = vmatpush1.msra.mxu0 0.0
    %878 = vmatprep.subr.mxu0 0.0
    %879 = vmatpush1.msra.mxu0 0.0
    %880 = vmatprep.subr.mxu0 0.0
    %881 = vmatpush1.msra.mxu0 0.0
    %882 = vmatprep.subr.mxu0 0.0
    %883 = vmatpush1.msra.mxu0 0.0
    %884 = vmatprep.subr.mxu0 0.0
    %885 = vmatpush1.msra.mxu0 0.0
    %886 = vmatprep.subr.mxu0 0.0
    %887 = vmatpush1.msra.mxu0 0.0
    %888 = vmatprep.subr.mxu0 0.0
    %889 = vmatpush1.msra.mxu0 0.0
    %890 = vmatprep.subr.mxu0 0.0
    %891 = vmatpush1.msra.mxu0 0.0
    %892 = vmatprep.subr.mxu0 0.0
    %893 = vmatpush1.msra.mxu0 0.0
    %894 = vmatprep.subr.mxu0 0.0
    %895 = vmatpush1.msra.mxu0 0.0
    %896 = vmatprep.subr.mxu0 0.0
    %897 = vmatpush1.msra.mxu0 0.0
    %898 = vmatprep.subr.mxu0 0.0
    %899 = vmatpush1.msra.mxu0 0.0
    %900 = vmatprep.subr.mxu0 0.0
    %901 = vmatpush1.msra.mxu0 0.0
    %902 = vmatprep.subr.mxu0 0.0
    %903 = vmatpush1.msra.mxu0 0.0
    %904 = vmatprep.subr.mxu0 0.0
    %905 = vmatpush1.msra.mxu0 0.0
    %906 = vmatprep.subr.mxu0 0.0
    %907 = vmatpush1.msra.mxu0 0.0
    %908 = vmatprep.subr.mxu0 0.0
    %909 = vmatpush1.msra.mxu0 0.0
    %910 = vmatprep.subr.mxu0 0.0
    %911 = vmatpush1.msra.mxu0 0.0
    %912 = vmatprep.subr.mxu0 0.0
    %913 = vmatpush1.msra.mxu0 0.0
    %914 = vmatprep.subr.mxu0 0.0
    %915 = vmatpush1.msra.mxu0 0.0
    %916 = vmatprep.mubr.f32.mxu0 0.0
    %917 = vmatmul.mubr.f32.gmra.mrb[0].mxu0 %v850
    %v918 = vpop.f32.mrb[0].mxu0
    %v919 = vadd.f32 0.0, %v918
    %v920 = vpop.f32.mrb[0].mxu0
    %921 = vdwg.mxu0
    %v922 = vadd.f32 %v846, %v919
    %v923 = vxor.u32 %v922, 2147483648
    %v924 = vmul.f32 %v923, 1.442695
    %v925 = vpow.pop %v924
    %v926 = vadd.f32 %v925, 1.0
    %v927 = vrcp.pop %v926
    %v928 = vmul.f32 1.0, %v927
    %v929 = vtanh.pop %v922
    %v930 = vmul.f32 %v928, %v838
    %932 = vrot.lane.b32.xlu0 %v929, 64
    %v933 = vpop.permute.xlu0 %932
    %v935 = vmul.f32 %v928, %v933
    %937 = vrot.lane.b32.xlu0 %v935, 32
    %v938 = vpop.permute.xlu0 %937
    %v940 = vadd.f32 %v930, %v938
    %v941 = vtanh.pop %v940
    %943 = vrot.lane.b32.xlu0 %v941, 64
    %v944 = vpop.permute.xlu0 %943
    %v946 = vmul.f32 %v928, %v944
    %s947 = scalar_lea.vmem [#allocation2], 56
    %v948 = vld [vmem:[%s947] sm:$0xff]
    %950 = vrot.lane.b32.xlu0 %v946, 32
    %v951 = vpop.permute.xlu0 %950
    %v952 = vsel %vm236, %v951, 0
    %954 = vmatprep.subr.mxu0 0.0
    %955 = vmatpush1.msra.mxu0 %v232
    %956 = vmatprep.subr.mxu0 0.0
    %957 = vmatpush1.msra.mxu0 %v233
    %958 = vmatprep.subr.mxu0 0.0
    %959 = vmatpush1.msra.mxu0 %v234
    %960 = vmatprep.subr.mxu0 0.0
    %961 = vmatpush1.msra.mxu0 %v235
    %962 = vmatprep.subr.mxu0 0.0
    %963 = vmatpush1.msra.mxu0 0.0
    %964 = vmatprep.subr.mxu0 0.0
    %965 = vmatpush1.msra.mxu0 0.0
    %966 = vmatprep.subr.mxu0 0.0
    %967 = vmatpush1.msra.mxu0 0.0
    %968 = vmatprep.subr.mxu0 0.0
    %969 = vmatpush1.msra.mxu0 0.0
    %970 = vmatprep.subr.mxu0 0.0
    %971 = vmatpush1.msra.mxu0 0.0
    %972 = vmatprep.subr.mxu0 0.0
    %973 = vmatpush1.msra.mxu0 0.0
    %974 = vmatprep.subr.mxu0 0.0
    %975 = vmatpush1.msra.mxu0 0.0
    %976 = vmatprep.subr.mxu0 0.0
    %977 = vmatpush1.msra.mxu0 0.0
    %978 = vmatprep.subr.mxu0 0.0
    %979 = vmatpush1.msra.mxu0 0.0
    %980 = vmatprep.subr.mxu0 0.0
    %981 = vmatpush1.msra.mxu0 0.0
    %982 = vmatprep.subr.mxu0 0.0
    %983 = vmatpush1.msra.mxu0 0.0
    %984 = vmatprep.subr.mxu0 0.0
    %985 = vmatpush1.msra.mxu0 0.0
    %986 = vmatprep.subr.mxu0 0.0
    %987 = vmatpush1.msra.mxu0 0.0
    %988 = vmatprep.subr.mxu0 0.0
    %989 = vmatpush1.msra.mxu0 0.0
    %990 = vmatprep.subr.mxu0 0.0
    %991 = vmatpush1.msra.mxu0 0.0
    %992 = vmatprep.subr.mxu0 0.0
    %993 = vmatpush1.msra.mxu0 0.0
    %994 = vmatprep.subr.mxu0 0.0
    %995 = vmatpush1.msra.mxu0 0.0
    %996 = vmatprep.subr.mxu0 0.0
    %997 = vmatpush1.msra.mxu0 0.0
    %998 = vmatprep.subr.mxu0 0.0
    %999 = vmatpush1.msra.mxu0 0.0
    %1000 = vmatprep.subr.mxu0 0.0
    %1001 = vmatpush1.msra.mxu0 0.0
    %1002 = vmatprep.subr.mxu0 0.0
    %1003 = vmatpush1.msra.mxu0 0.0
    %1004 = vmatprep.subr.mxu0 0.0
    %1005 = vmatpush1.msra.mxu0 0.0
    %1006 = vmatprep.subr.mxu0 0.0
    %1007 = vmatpush1.msra.mxu0 0.0
    %1008 = vmatprep.subr.mxu0 0.0
    %1009 = vmatpush1.msra.mxu0 0.0
    %1010 = vmatprep.subr.mxu0 0.0
    %1011 = vmatpush1.msra.mxu0 0.0
    %1012 = vmatprep.subr.mxu0 0.0
    %1013 = vmatpush1.msra.mxu0 0.0
    %1014 = vmatprep.subr.mxu0 0.0
    %1015 = vmatpush1.msra.mxu0 0.0
    %1016 = vmatprep.subr.mxu0 0.0
    %1017 = vmatpush1.msra.mxu0 0.0
    %1018 = vmatprep.mubr.f32.mxu0 0.0
    %1019 = vmatmul.mubr.f32.gmra.mrb[0].mxu0 %v952
    %v1020 = vpop.f32.mrb[0].mxu0
    %v1021 = vadd.f32 0.0, %v1020
    %v1022 = vpop.f32.mrb[0].mxu0
    %1023 = vdwg.mxu0
    %v1024 = vadd.f32 %v948, %v1021
    %v1025 = vxor.u32 %v1024, 2147483648
    %v1026 = vmul.f32 %v1025, 1.442695
    %v1027 = vpow.pop %v1026
    %v1028 = vadd.f32 %v1027, 1.0
    %v1029 = vrcp.pop %v1028
    %v1030 = vmul.f32 1.0, %v1029
    %v1031 = vtanh.pop %v1024
    %v1032 = vmul.f32 %v1030, %v940
    %1034 = vrot.lane.b32.xlu0 %v1031, 64
    %v1035 = vpop.permute.xlu0 %1034
    %v1037 = vmul.f32 %v1030, %v1035
    %1039 = vrot.lane.b32.xlu0 %v1037, 32
    %v1040 = vpop.permute.xlu0 %1039
    %v1042 = vadd.f32 %v1032, %v1040
    %v1043 = vtanh.pop %v1042
    %1045 = vrot.lane.b32.xlu0 %v1043, 64
    %v1046 = vpop.permute.xlu0 %1045
    %v1048 = vmul.f32 %v1030, %v1046
    %v1049 = vld [vmem:[%s4] sm:$0xff]
    %v1050 = vld [vmem:[%s4 + $0x8] sm:$0xff]
    %v1051 = vld [vmem:[%s4 + $0x10] sm:$0xff]
    %v1052 = vld [vmem:[%s4 + $0x18] sm:$0xff]
    %v1053 = vld [vmem:[%s5] sm:$0x1]
    %v1055 = vlaneseq
    %v1056 = vshrl.u32 %v1055, 7
    %v1057 = vsub.s32 0, %v1056
    %v1058 = vrot.slane %v1053, %v1057
    %1061 = vrot.lane.b32.xlu0 %v1048, 32
    %v1062 = vpop.permute.xlu0 %1061
    %v1063 = vsel %vm236, %v1062, 0
    %1065 = vmatprep.subr.mxu0 0.0
    %1066 = vmatpush1.msra.mxu0 %v1049
    %1067 = vmatprep.subr.mxu0 0.0
    %1068 = vmatpush1.msra.mxu0 %v1050
    %1069 = vmatprep.subr.mxu0 0.0
    %1070 = vmatpush1.msra.mxu0 %v1051
    %1071 = vmatprep.subr.mxu0 0.0
    %1072 = vmatpush1.msra.mxu0 %v1052
    %1073 = vmatprep.subr.mxu0 0.0
    %1074 = vmatpush1.msra.mxu0 0.0
    %1075 = vmatprep.subr.mxu0 0.0
    %1076 = vmatpush1.msra.mxu0 0.0
    %1077 = vmatprep.subr.mxu0 0.0
    %1078 = vmatpush1.msra.mxu0 0.0
    %1079 = vmatprep.subr.mxu0 0.0
    %1080 = vmatpush1.msra.mxu0 0.0
    %1081 = vmatprep.subr.mxu0 0.0
    %1082 = vmatpush1.msra.mxu0 0.0
    %1083 = vmatprep.subr.mxu0 0.0
    %1084 = vmatpush1.msra.mxu0 0.0
    %1085 = vmatprep.subr.mxu0 0.0
    %1086 = vmatpush1.msra.mxu0 0.0
    %1087 = vmatprep.subr.mxu0 0.0
    %1088 = vmatpush1.msra.mxu0 0.0
    %1089 = vmatprep.subr.mxu0 0.0
    %1090 = vmatpush1.msra.mxu0 0.0
    %1091 = vmatprep.subr.mxu0 0.0
    %1092 = vmatpush1.msra.mxu0 0.0
    %1093 = vmatprep.subr.mxu0 0.0
    %1094 = vmatpush1.msra.mxu0 0.0
    %1095 = vmatprep.subr.mxu0 0.0
    %1096 = vmatpush1.msra.mxu0 0.0
    %1097 = vmatprep.subr.mxu0 0.0
    %1098 = vmatpush1.msra.mxu0 0.0
    %1099 = vmatprep.subr.mxu0 0.0
    %1100 = vmatpush1.msra.mxu0 0.0
    %1101 = vmatprep.subr.mxu0 0.0
    %1102 = vmatpush1.msra.mxu0 0.0
    %1103 = vmatprep.subr.mxu0 0.0
    %1104 = vmatpush1.msra.mxu0 0.0
    %1105 = vmatprep.subr.mxu0 0.0
    %1106 = vmatpush1.msra.mxu0 0.0
    %1107 = vmatprep.subr.mxu0 0.0
    %1108 = vmatpush1.msra.mxu0 0.0
    %1109 = vmatprep.subr.mxu0 0.0
    %1110 = vmatpush1.msra.mxu0 0.0
    %1111 = vmatprep.subr.mxu0 0.0
    %1112 = vmatpush1.msra.mxu0 0.0
    %1113 = vmatprep.subr.mxu0 0.0
    %1114 = vmatpush1.msra.mxu0 0.0
    %1115 = vmatprep.subr.mxu0 0.0
    %1116 = vmatpush1.msra.mxu0 0.0
    %1117 = vmatprep.subr.mxu0 0.0
    %1118 = vmatpush1.msra.mxu0 0.0
    %1119 = vmatprep.subr.mxu0 0.0
    %1120 = vmatpush1.msra.mxu0 0.0
    %1121 = vmatprep.subr.mxu0 0.0
    %1122 = vmatpush1.msra.mxu0 0.0
    %1123 = vmatprep.subr.mxu0 0.0
    %1124 = vmatpush1.msra.mxu0 0.0
    %1125 = vmatprep.subr.mxu0 0.0
    %1126 = vmatpush1.msra.mxu0 0.0
    %1127 = vmatprep.subr.mxu0 0.0
    %1128 = vmatpush1.msra.mxu0 0.0
    %1129 = vmatprep.mubr.f32.mxu0 0.0
    %1130 = vmatmul.mubr.f32.gmra.mrb[0].mxu0 %v1063
    %v1131 = vpop.f32.mrb[0].mxu0
    %v1132 = vadd.f32 %v1058, %v1131
    %v1133 = vpop.f32.mrb[0].mxu0
    %1134 = vdwg.mxu0
    %1135 = vst [vmem:[%s6] sm:$0xff] %v1132
    // Predicated region
    $region30: #{highest_number_lstm_forward.1} parent=1 // pred_check
      _
    $region31: #{highest_number_lstm_forward.1} parent=1 // pred_check_branch
      %1137 = sbr.rel (0) target = $region33
    $region32: #{highest_number_lstm_forward.1} parent=1 // pred_region
      _
    $region33: #{highest_number_lstm_forward.1} parent=1 // pred_fallthru
      _
    // Predicated region
    $region34: #{highest_number_lstm_forward.1} parent=1 // pred_check
      _
    $region35: #{highest_number_lstm_forward.1} parent=1 // pred_check_branch
      %1139 = sbr.rel (0) target = $region37
    $region36: #{highest_number_lstm_forward.1} parent=1 // pred_region
      _
    $region37: #{highest_number_lstm_forward.1} parent=1 // pred_fallthru
      _
    %1140 = vsyncpa [#allocation4], 1

</llo_original>
